<compile_context>
chip_gen: v6e
topology: v6e:2x2x1
jax: 0.10.0
libtpu: 0.0.40
codegen_flags: <defaults>
</compile_context>

<pallas_src>
import jax
import jax.numpy as jnp
from jax.experimental import pallas as pl
from jax.experimental.pallas import tpu as pltpu


# ----------------------------------------------------------------------------
# Kernel body
# ----------------------------------------------------------------------------
def _shuffle_block_kernel(x_ref, o_ref):
    # x_ref: (gi, ci, hs, lane)  ->  o_ref: (ci, gi, hs, lane)
    # Swapping the two leading (non-layout) axes only permutes whole
    # (hs, lane) slabs; the minor two dims are untouched, so this costs the
    # same vld/vst as a straight copy.
    o_ref[...] = jnp.swapaxes(x_ref[...], 0, 1)


# ----------------------------------------------------------------------------
# Tiling helpers
# ----------------------------------------------------------------------------
def _round_up(n: int, m: int) -> int:
    return ((n + m - 1) // m) * m


def _largest_divisor_leq(n: int, cap: int) -> int:
    cap = max(1, min(n, cap))
    for d in range(cap, 0, -1):
        if n % d == 0:
            return d
    return 1


def _vmem_capacity_bytes() -> int:
    # Trace-time hardware query; fall back to the tightest chip (v7x, 64 MiB)
    # so unknown environments still get a safe block size / vmem limit.
    try:
        return int(pltpu.get_tpu_info().vmem_capacity_bytes)
    except Exception:
        return 64 << 20


def _pick_target_block_bytes(vmem_capacity: int) -> int:
    if vmem_capacity <= (64 << 20):
        # v7x: at 3.2 TB/s the fixed per-step cost is ~1 MiB of lost transfer,
        # so use big blocks; footprint 16 MiB fits the 32 MiB scoped default.
        return 4 << 20
    # v5e/v6e: 2 MiB blocks keep the pipeline at 8 MiB (under v5e's 16 MiB
    # scoped default) while already giving ~85% of the copy roofline.
    return 2 << 20


# ----------------------------------------------------------------------------
# Wrapper
# ----------------------------------------------------------------------------
def channel_shuffle_pallas(x: jax.Array, groups: int,
                           target_block_bytes: int | None = None) -> jax.Array:
    """ShuffleNet channel shuffle on an NCHW tensor via a Pallas TPU kernel."""
    B, C, H, W = x.shape
    if C % groups != 0:
        raise ValueError("channels must be divisible by groups")
    cpg = C // groups
    HW = H * W
    itemsize = jnp.dtype(x.dtype).itemsize
    sub_pack = 8 * max(1, 4 // itemsize)       # sublane tile: 8 f32 / 16 bf16 / 32 i8

    vmem_capacity = _vmem_capacity_bytes()
    if target_block_bytes is None:
        target_block_bytes = _pick_target_block_bytes(vmem_capacity)

    # --- spatial factorization: HW = HWs * lane (lane-dense last dim) -------
    if HW % 128 == 0:
        lane = 128
        HWs = HW // 128
    else:
        lane = HW                              # full-dim last block dim is legal
        HWs = 1
    lane_pad = _round_up(lane, 128)            # VMEM lane padding

    # --- spatial (sublane-axis) tile hs, padding-aware -----------------------
    hs = HWs
    if _round_up(HWs, sub_pack) * lane_pad * itemsize > target_block_bytes:
        cap = max(1, target_block_bytes // (lane_pad * itemsize))
        cand = _largest_divisor_leq(HWs, cap)
        while cand > 1 and cand % sub_pack != 0:
            cand = _largest_divisor_leq(HWs, cand - 1)
        if cand % sub_pack == 0:
            hs = cand
        # else: no packing-aligned divisor under the cap -> keep full HWs; the
        # vmem_limit_bytes safety net below keeps compilation from failing.
    hs_pad = _round_up(hs, sub_pack)
    slab_bytes = hs_pad * lane_pad * itemsize  # padded VMEM bytes per (g, c) slab

    # --- tile BOTH channel axes (balanced gi ~= ci) ---------------------------
    # Read runs are ci*HW bytes, write runs gi*HW bytes: balancing them keeps
    # both DMA directions near the HBM roofline even for small spatial sizes.
    budget_ch = max(1, target_block_bytes // slab_bytes)
    gi = _largest_divisor_leq(groups, max(1, int(budget_ch ** 0.5)))
    ci = _largest_divisor_leq(cpg, max(1, budget_ch // gi))
    gi = _largest_divisor_leq(groups, max(1, budget_ch // ci))   # regrow gi
    block_bytes = gi * ci * slab_bytes

    # --- grid: largest extent leading, all axes parallel (v7x TC balance) ----
    extents = {"b": B, "g": groups // gi, "c": cpg // ci, "t": HWs // hs}
    order = sorted(("b", "g", "c", "t"), key=lambda k: -extents[k])
    pos = {name: i for i, name in enumerate(order)}
    grid = tuple(extents[name] for name in order)

    def in_map(*idx):
        return (idx[pos["b"]], idx[pos["g"]], idx[pos["c"]], idx[pos["t"]], 0)

    def out_map(*idx):
        # Swap the two channel block axes: the DMA does the shuffle.
        return (idx[pos["b"]], idx[pos["c"]], idx[pos["g"]], idx[pos["t"]], 0)

    in_spec = pl.BlockSpec((None, gi, ci, hs, lane), in_map)
    out_spec = pl.BlockSpec((None, ci, gi, hs, lane), out_map)
    # TODO(synk): if short strided writes remain exposed (tiny HW, tiny groups),
    # deepen the pipeline with pipeline_mode=pl.Buffered(3) on these specs.

    # --- compiler params: raise scoped VMEM only if the pipeline needs it ----
    compiler_kwargs = dict(dimension_semantics=("parallel",) * len(grid))
    footprint = 4 * block_bytes + (1 << 20)    # in+out, double-buffered, + slack
    if footprint > (12 << 20):                 # conservative vs v5e 16 MiB default
        compiler_kwargs["vmem_limit_bytes"] = int(
            min(vmem_capacity - (8 << 20),
                max(32 << 20, footprint + (8 << 20))))

    x5 = x.reshape(B, groups, cpg, HWs, lane)

    out5 = pl.pallas_call(
        _shuffle_block_kernel,
        out_shape=jax.ShapeDtypeStruct((B, cpg, groups, HWs, lane), x.dtype),
        grid=grid,
        in_specs=[in_spec],
        out_specs=out_spec,
        compiler_params=pltpu.CompilerParams(**compiler_kwargs),
        cost_estimate=pl.CostEstimate(
            flops=0, transcendentals=0,
            bytes_accessed=2 * x.size * itemsize),
    )(x5)

    # Contiguous reshape of (B, cpg, groups, HW) gives channel order
    # c_out = i*groups + g — exactly torch.transpose(1, 2).contiguous().view().
    return out5.reshape(B, C, H, W)
    # TODO(synk): in a full ShuffleNet, fuse this permutation into the
    # producer/consumer kernel's index_map instead of spending a standalone
    # HBM read+write (that fusion is strictly larger than any tuning here).


def channel_shuffle_ref(x: jax.Array, groups: int) -> jax.Array:
    """Pure-JAX reference matching the PyTorch semantics."""
    B, C, H, W = x.shape
    cpg = C // groups
    y = x.reshape(B, groups, cpg, H, W)
    y = jnp.swapaxes(y, 1, 2)
    return y.reshape(B, C, H, W)


class ChannelShuffle:
    """Thin wrapper mirroring the PyTorch module (no parameters)."""

    def __init__(self, channels: int, groups: int):
        if channels % groups != 0:
            raise ValueError("channels must be divisible by groups")
        self.groups = groups

    def __call__(self, x):
        return channel_shuffle_pallas(x, self.groups)


if __name__ == "__main__":
    key = jax.random.PRNGKey(0)
    B, C, H, W = 2, 4, 16, 16
    groups = 2

    x = jax.random.normal(key, (B, C, H, W), dtype=jnp.float32)

    module = ChannelShuffle(channels=C, groups=groups)
    y = jax.block_until_ready(module(x))

    y_ref = channel_shuffle_ref(x, groups)
    assert y.shape == x.shape and y.dtype == x.dtype
    assert jnp.array_equal(y, y_ref), "Pallas channel shuffle mismatch vs reference"

    # Second config: odd spatial size (HW % 128 != 0) exercising the
    # both-channel-axes tiled path (gi=3, ci=4) with short write runs.
    x2 = jax.random.normal(jax.random.PRNGKey(1), (2, 12, 7, 7), dtype=jnp.float32)
    y2 = jax.block_until_ready(channel_shuffle_pallas(x2, groups=3))
    assert jnp.array_equal(y2, channel_shuffle_ref(x2, 3)), \
        "Pallas channel shuffle mismatch vs reference (odd HW)"

    print("KERNEL_OK")
</pallas_src>

<mosaic_0001>
module attributes {stable_mosaic.version = 11 : i64} {
  func.func @_shuffle_block_kernel(%arg0: i32, %arg1: i32, %arg2: i32, %arg3: i32, %arg4: memref<1x2x2x2x128xf32, #tpu.memory_space<vmem>>, %arg5: memref<1x2x2x2x128xf32, #tpu.memory_space<vmem>>) attributes {dimension_semantics = [#tpu.dimension_semantics<parallel>, #tpu.dimension_semantics<parallel>, #tpu.dimension_semantics<parallel>, #tpu.dimension_semantics<parallel>], iteration_bounds = array<i64: 2, 1, 1, 1>, scalar_prefetch = 0 : i64, scratch_operands = 0 : i64, tpu.core_type = #tpu.core_type<tc>, window_params = [{transform_indices = @transform_0, window_bounds = array<i64: 1, 2, 2, 2, 128>}, {transform_indices = @transform_1, window_bounds = array<i64: 1, 2, 2, 2, 128>}]} {
    %c0 = arith.constant 0 : index
    %c0_0 = arith.constant 0 : index
    %c0_1 = arith.constant 0 : index
    %c0_2 = arith.constant 0 : index
    %c0_3 = arith.constant 0 : index
    %0 = vector.load %arg4[%c0, %c0_0, %c0_1, %c0_2, %c0_3] : memref<1x2x2x2x128xf32, #tpu.memory_space<vmem>>, vector<1x2x2x2x128xf32>
    %1 = vector.shape_cast %0 : vector<1x2x2x2x128xf32> to vector<2x2x2x128xf32>
    %2 = tpu.transpose %1, [1, 0, 2, 3] : vector<2x2x2x128xf32> -> vector<2x2x2x128xf32>
    %c0_4 = arith.constant 0 : index
    %c0_5 = arith.constant 0 : index
    %c0_6 = arith.constant 0 : index
    %c0_7 = arith.constant 0 : index
    %c0_8 = arith.constant 0 : index
    %3 = vector.load %arg5[%c0_4, %c0_5, %c0_6, %c0_7, %c0_8] : memref<1x2x2x2x128xf32, #tpu.memory_space<vmem>>, vector<1x2x2x2x128xf32>
    %4 = vector.shape_cast %3 : vector<1x2x2x2x128xf32> to vector<2x2x2x128xf32>
    %5 = vector.shape_cast %2 : vector<2x2x2x128xf32> to vector<1x2x2x2x128xf32>
    tpu.vector_store %arg5[%c0_4, %c0_5, %c0_6, %c0_7, %c0_8], %5 {strides = array<i32>} : memref<1x2x2x2x128xf32, #tpu.memory_space<vmem>>, vector<1x2x2x2x128xf32>,
    return
  }
  func.func @transform_0(%arg0: i32, %arg1: i32, %arg2: i32, %arg3: i32) -> (i32, i32, i32, i32, i32) {
    %c0_i32 = arith.constant 0 : i32
    %c0_i32_0 = arith.constant 0 : i32
    return %arg0, %arg1, %arg2, %arg3, %c0_i32 : i32, i32, i32, i32, i32
  }
  func.func @transform_1(%arg0: i32, %arg1: i32, %arg2: i32, %arg3: i32) -> (i32, i32, i32, i32, i32) {
    %c0_i32 = arith.constant 0 : i32
    %c0_i32_0 = arith.constant 0 : i32
    return %arg0, %arg2, %arg1, %arg3, %c0_i32 : i32, i32, i32, i32, i32
  }
}

</mosaic_0001>

<llo_original>
// kernel: tpu_custom_call.1
$region0: #{tpu_custom_call.1}
  #allocation0 [shape = 'u32[]', space=smem, size = 0x4, offset = 0x4, fixed_abs, tag = 'smem constant byte address 0x4 - core index']
  #allocation1 [shape = 'u32[144,128]{1,0:T(1,128)}', space=vmem, size = 0x12000, scoped, tag = 'internal scratch']
  %s0 = inlined_call_operand.hbm [shape: f32[2,2,2,2,128], index: 0, kind: input, shape index: {}]
  %s1 = inlined_call_operand.hbm [shape: f32[2,2,2,2,128], index: 1, kind: output, shape index: {}]
  %s2 = sld [smem:[#allocation0]]
  $region41: #{tpu_custom_call.1} parent=0
    _
  %s4 = ssub.s32 1, %s2
  %s5 = scalar_select 0, %s4, %s2
  $region1: #{tpu_custom_call.1} parent=0
    #allocation2 [shape = 'u8[8192]{0}', space=vmem, size = 0x2000, scoped, tag = 'input window, operand 0']
    #allocation3 [shape = 's32[2]{0}', space=sflag, size = 0x8, scoped, tag = 'scoped memory for tpu_custom_call.1']
    #allocation4 [shape = 's32[2]{0}', space=sflag, size = 0x8, scoped, tag = 'scoped memory for tpu_custom_call.1']
    #allocation5 [shape = 'u8[8192]{0}', space=vmem, size = 0x2000, scoped, tag = 'output window, operand 0']
    %6 = vsyncpa [#allocation3], 0
    %s7 = scalar_lea.sflag [#allocation3], 1
    %8 = vsyncpa %s7, 0
    %9 = vsyncpa [#allocation4], 0
    %s10 = scalar_lea.sflag [#allocation4], 1
    %11 = vsyncpa %s10, 0
    loop: start=0, step=1, limit=4
    $region2: #{tpu_custom_call.1} parent=1 // loop_pre_header
      _
    $region3: #{tpu_custom_call.1} parent=1 // loop_header
      %s13 = sphi 0, %s17
      %p14 = scmp.ge.s32.totalorder %s13, 4
      %s20 = sphi 0, %s46
      %s21 = sphi 0, %s42
      %s22 = sphi 0, %s38
      %s23 = sphi 0, %s34
      %s24 = sphi 0, %s20
      %s25 = sphi 0, %s21
      %s26 = sphi 0, %s22
      %s27 = sphi 0, %s23
      %s28 = sphi 0, %s24
      %s29 = sphi 0, %s25
      %s30 = sphi 0, %s26
      %s31 = sphi 0, %s27
      %s55 = sphi 0, %s57
      %s58 = sphi 0, %s55
      %s59 = sphi 0, %s58
      %s75 = sphi 0, %s59
      %s87 = sphi 0, %s89
      %s90 = sphi 0, %s87
      %s91 = sphi 0, %s90
      %s107 = sphi 0, %s91
    $region4: #{tpu_custom_call.1} parent=1 // loop_header_branch
      %16 = sbr.rel (%p14) target = $region8
    $region5: #{tpu_custom_call.1} parent=1 // loop_body
      %s18 = ssub.s32 %s13, 1
      %s19 = ssub.s32 %s13, 2
      %s32 = sadd.s32 1, %s23
      %p33 = scmp.ge.s32.totalorder %s32, 1
      %s34 = scalar_select %p33, 0, %s32
      %s35 = sadd.s32 1, %s22
      %s36 = scalar_select %p33, %s35, %s22
      %p37 = scmp.ge.s32.totalorder %s36, 1
      %s38 = scalar_select %p37, 0, %s36
      %s39 = sadd.s32 1, %s21
      %s40 = scalar_select %p37, %s39, %s21
      %p41 = scmp.ge.s32.totalorder %s40, 1
      %s42 = scalar_select %p41, 0, %s40
      %s43 = sadd.s32 1, %s20
      %s44 = scalar_select %p41, %s43, %s20
      %p45 = scmp.ge.s32.totalorder %s44, 2
      %s46 = scalar_select %p45, 0, %s44
      %s47 = ssub.s32 %s20, %s46
      %s48 = ssub.s32 %s21, %s42
      %s49 = sor.u32 %s47, %s48
      %s50 = ssub.s32 %s22, %s38
      %s51 = sor.u32 %s49, %s50
      %s52 = ssub.s32 %s23, %s34
      %s53 = sor.u32 %s51, %s52
      %p54 = scmp.eq.s32.totalorder %s53, 0
      %s56 = sadd.s32 %s55, 1
      %s57 = scalar_select %p54, %s55, %s56
      %p60 = pneg %p54
      %p61 = scmp.eq.s32.totalorder %s13, 1
      %p62 = por %p60, %p61
      %p63 = scmp.ne.s32.totalorder %s55, %s58
      %p64 = scmp.eq.s32.totalorder %s13, 0
      %p65 = por %p63, %p64
      %p66 = scmp.ne.s32.totalorder %s55, %s58
      %p67 = scmp.eq.s32.totalorder %s18, 1
      %p68 = por %p66, %p67
      %p69 = scmp.ne.s32.totalorder %s58, %s59
      %p70 = scmp.eq.s32.totalorder %s18, 0
      %p71 = por %p69, %p70
      %p72 = scmp.ne.s32.totalorder %s58, %s59
      %p73 = scmp.eq.s32.totalorder %s19, 1
      %p74 = por %p72, %p73
      %p76 = scmp.ne.s32.totalorder %s59, %s75
      %p77 = scmp.eq.s32.totalorder %s19, 0
      %p78 = por %p76, %p77
      %s79 = ssub.s32 %s20, %s46
      %s80 = ssub.s32 %s22, %s38
      %s81 = sor.u32 %s79, %s80
      %s82 = ssub.s32 %s21, %s42
      %s83 = sor.u32 %s81, %s82
      %s84 = ssub.s32 %s23, %s34
      %s85 = sor.u32 %s83, %s84
      %p86 = scmp.eq.s32.totalorder %s85, 0
      %s88 = sadd.s32 %s87, 1
      %s89 = scalar_select %p86, %s87, %s88
      %p92 = pneg %p86
      %p93 = scmp.eq.s32.totalorder %s13, 1
      %p94 = por %p92, %p93
      %p95 = scmp.ne.s32.totalorder %s87, %s90
      %p96 = scmp.eq.s32.totalorder %s13, 0
      %p97 = por %p95, %p96
      %p98 = scmp.ne.s32.totalorder %s87, %s90
      %p99 = scmp.eq.s32.totalorder %s18, 1
      %p100 = por %p98, %p99
      %p101 = scmp.ne.s32.totalorder %s90, %s91
      %p102 = scmp.eq.s32.totalorder %s18, 0
      %p103 = por %p101, %p102
      %p104 = scmp.ne.s32.totalorder %s90, %s91
      %p105 = scmp.eq.s32.totalorder %s19, 1
      %p106 = por %p104, %p105
      %p108 = scmp.ne.s32.totalorder %s91, %s107
      %p109 = scmp.eq.s32.totalorder %s19, 0
      %p110 = por %p108, %p109
      %p111 = scmp.le.s32.totalorder 1, %s13
      %p112 = scmp.lt.s32.totalorder %s13, 3
      %p113 = pnand %p111, %p112
      %p114 = pneg %p113
      // Predicated region
      $region9: #{tpu_custom_call.1} parent=5 // pred_check
        _
      $region10: #{tpu_custom_call.1} parent=5 // pred_check_branch
        %116 = sbr.rel (%p113) target = $region12
      $region11: #{tpu_custom_call.1} parent=5 // pred_region
        %s117 = ssub.s32 %s13, 1
      $region12: #{tpu_custom_call.1} parent=5 // pred_fallthru
        _
      %p118 = scmp.lt.s32.totalorder %s13, 2
      // Predicated region
      $region13: #{tpu_custom_call.1} parent=5 // pred_check
        %p119 = pneg %p118
      $region14: #{tpu_custom_call.1} parent=5 // pred_check_branch
        %121 = sbr.rel (%p119) target = $region16
      $region15: #{tpu_custom_call.1} parent=5 // pred_region
        // Predicated region
        $region17: #{tpu_custom_call.1} parent=15 // pred_check
          %p122 = pneg %p65
        $region18: #{tpu_custom_call.1} parent=15 // pred_check_branch
          %124 = sbr.rel (%p122) target = $region20
        $region19: #{tpu_custom_call.1} parent=15 // pred_region
          %s125 = sand.u32 %s55, 1
          %s126 = scalar_lea.sflag [#allocation3], %s125
          %s127 = sand.u32 %s55, 1
          %s128 = smul.addr %s127, 8
          %s129 = scalar_lea.vmem [#allocation2], %s128
          %s130 = smul.u32 2, %s21
          %s131 = smul.u32 2, %s22
          %s133 = ssub.s32 128, 128
          %134 = vsyncadd %s126, %s133
          %s135 = sadd.s32 %s23, %s131
          %s136 = smul.addr %s130, 2
          %s137 = sadd.s32 %s135, %s136
          %s138 = smul.addr %s20, 4
          %s139 = sadd.s32 %s137, %s138
          %s140 = smul.addr %s139, 32
          %s141 = scalar_lea.hbm %s0, %s140
          %s142 = sshll.u32 %s129, 4
          %s143 = int_to_ptr.vmem [resolvable:$true] %s142
          %148 = dma.hbm_to_vmem [thread:$0]  %s141, 128, %s143, %s126, 32, 32, 2
        $region20: #{tpu_custom_call.1} parent=15 // pred_fallthru
          _
      $region16: #{tpu_custom_call.1} parent=5 // pred_fallthru
        _
      %p149 = scmp.le.s32.totalorder 1, %s13
      %p150 = scmp.lt.s32.totalorder %s13, 3
      %p151 = pnand %p149, %p150
      %p152 = pneg %p151
      // Predicated region
      $region21: #{tpu_custom_call.1} parent=5 // pred_check
        _
      $region22: #{tpu_custom_call.1} parent=5 // pred_check_branch
        %154 = sbr.rel (%p151) target = $region24
      $region23: #{tpu_custom_call.1} parent=5 // pred_region
        %s155 = ssub.s32 %s13, 1
        %s156 = sand.u32 %s58, 1
        %s157 = scalar_lea.sflag [#allocation3], %s156
        %s158 = sand.u32 %s58, 1
        %s159 = smul.addr %s158, 8
        %s160 = scalar_lea.vmem [#allocation2], %s159
        // Predicated region
        $region25: #{tpu_custom_call.1} parent=23 // pred_check
          %p161 = pneg %p71
        $region26: #{tpu_custom_call.1} parent=23 // pred_check_branch
          %163 = sbr.rel (%p161) target = $region28
        $region27: #{tpu_custom_call.1} parent=23 // pred_region
          %164 = dma.done %s157, 128
        $region28: #{tpu_custom_call.1} parent=23 // pred_fallthru
          _
        %s165 = sand.u32 %s58, 1
        %s166 = scalar_lea.sflag [#allocation3], %s165
        %s167 = sand.u32 %s58, 1
        %s168 = smul.addr %s167, 8
        %s169 = scalar_lea.vmem [#allocation2], %s168
        %p170 = pneg %p71
        %p171 = pneg %p68
        %p172 = pneg %p103
        %p173 = pneg %p100
        %s174 = sand.u32 %s90, 1
        %s175 = scalar_lea.sflag [#allocation4], %s174
        %s176 = sand.u32 %s90, 1
        %s177 = smul.addr %s176, 8
        %s178 = scalar_lea.vmem [#allocation5], %s177
        %s179 = smul.u32 2, %s25
        %s180 = smul.u32 2, %s26
        %s181 = smul.u32 2, %s26
        %s182 = smul.u32 2, %s25
        %v183 = vld [vmem:[%s160] sm:$0x3]
        %v184 = vld [vmem:[%s160 + $0x2] sm:$0x3]
        %v185 = vld [vmem:[%s160 + $0x4] sm:$0x3]
        %v186 = vld [vmem:[%s160 + $0x6] sm:$0x3]
        %187 = vst [vmem:[%s178] sm:$0x3] %v183
        %188 = vst [vmem:[%s178 + $0x2] sm:$0x3] %v185
        %189 = vst [vmem:[%s178 + $0x4] sm:$0x3] %v184
        %190 = vst [vmem:[%s178 + $0x6] sm:$0x3] %v186
        %s191 = sand.u32 %s90, 1
        %s192 = scalar_lea.sflag [#allocation4], %s191
        %s193 = sand.u32 %s90, 1
        %s194 = smul.addr %s193, 8
        %s195 = scalar_lea.vmem [#allocation5], %s194
        // Predicated region
        $region29: #{tpu_custom_call.1} parent=23 // pred_check
          %p196 = pneg %p100
        $region30: #{tpu_custom_call.1} parent=23 // pred_check_branch
          %198 = sbr.rel (%p196) target = $region32
        $region31: #{tpu_custom_call.1} parent=23 // pred_region
          %s199 = smul.u32 2, %s26
          %s200 = smul.u32 2, %s25
          %s202 = ssub.s32 128, 128
          %203 = vsyncadd %s192, %s202
          %s204 = sadd.s32 %s27, %s200
          %s205 = smul.addr %s199, 2
          %s206 = sadd.s32 %s204, %s205
          %s207 = smul.addr %s24, 4
          %s208 = sadd.s32 %s206, %s207
          %s209 = smul.addr %s208, 32
          %s210 = scalar_lea.hbm %s1, %s209
          %s211 = sshll.u32 %s195, 4
          %s212 = int_to_ptr.vmem [resolvable:$true] %s211
          %217 = dma.vmem_to_hbm [thread:$0]  %s212, 128, %s210, %s192, 32, 32, 2
        $region32: #{tpu_custom_call.1} parent=23 // pred_fallthru
          _
      $region24: #{tpu_custom_call.1} parent=5 // pred_fallthru
        _
      %p218 = scmp.le.s32.totalorder 2, %s13
      // Predicated region
      $region33: #{tpu_custom_call.1} parent=5 // pred_check
        %p219 = pneg %p218
      $region34: #{tpu_custom_call.1} parent=5 // pred_check_branch
        %221 = sbr.rel (%p219) target = $region36
      $region35: #{tpu_custom_call.1} parent=5 // pred_region
        %s222 = ssub.s32 %s13, 2
        // Predicated region
        $region37: #{tpu_custom_call.1} parent=35 // pred_check
          %p223 = pneg %p106
        $region38: #{tpu_custom_call.1} parent=35 // pred_check_branch
          %225 = sbr.rel (%p223) target = $region40
        $region39: #{tpu_custom_call.1} parent=35 // pred_region
          %s226 = sand.u32 %s91, 1
          %s227 = scalar_lea.sflag [#allocation4], %s226
          %s228 = sand.u32 %s91, 1
          %s229 = smul.addr %s228, 8
          %s230 = scalar_lea.vmem [#allocation5], %s229
          %231 = dma.done %s227, 128
        $region40: #{tpu_custom_call.1} parent=35 // pred_fallthru
          _
      $region36: #{tpu_custom_call.1} parent=5 // pred_fallthru
        _
    $region6: #{tpu_custom_call.1} parent=1 // loop_footer
      %s17 = sadd.s32 1, %s13
    $region7: #{tpu_custom_call.1} parent=1 // loop_footer_branch
      %12 = sbr.rel target = $region3
    $region8: #{tpu_custom_call.1} parent=1 // loop_exit
      _
    %232 = vsyncpa [#allocation3], 1
    %s233 = scalar_lea.sflag [#allocation3], 1
    %234 = vsyncpa %s233, 1
    %235 = vsyncpa [#allocation4], 1
    %s236 = scalar_lea.sflag [#allocation4], 1
    %237 = vsyncpa %s236, 1

</llo_original>
